<compile_context>
chip_gen: v5e
topology: v5e:2x2
jax: 0.10.0
libtpu: 0.0.40
codegen_flags: <defaults>
</compile_context>

<pallas_src>
import functools

import numpy as np
import jax
import jax.numpy as jnp
from jax.experimental import pallas as pl
from jax.experimental.pallas import tpu as pltpu


# ----------------------------- Haar matrix (glue) ---------------------------
def haar_1d_matrix(n):
    if np.log2(n) % 1 > 0:
        raise ValueError("n must be a power of 2")
    if n == 1:
        return np.array([[1.0]])
    H_next = haar_1d_matrix(n // 2)
    upper = np.kron(H_next, [1, 1])
    lower = np.kron(np.eye(len(H_next)), [1, -1])
    return np.vstack((upper, lower))


def haar_matrix(N):
    H = haar_1d_matrix(N).astype(np.float32)
    norms = np.linalg.norm(H, axis=1, keepdims=True)
    return (H / norms).astype(np.float32)


# ------------------------------- Pallas kernel ------------------------------
def _haar2d_kernel(kr_ref, kc_ref, x_ref, o_ref, *, step, inv_tau, v_threshold):
    # kr_ref: (N*N, N*N) bf16 -- kron(I_N, H.T): flat row transform (right-mul)
    # kc_ref: (N*N, N*N) bf16 -- kron(H.T, I_N): flat col transform (right-mul)
    # x_ref : (step, TILE, N*N) f32 block (lane-dense last dim)
    # o_ref : (step, TILE, N*N) f32 block
    Kr = kr_ref[...]
    Kc = kc_ref[...]
    x = x_ref[...]                       # (S, T, D) f32
    S, T, D = x.shape

    # Row transform for ALL timesteps in one bf16 MXU matmul (f32 accumulate).
    y = jnp.dot(x.reshape(S * T, D).astype(jnp.bfloat16), Kr,
                preferred_element_type=jnp.float32).reshape(S, T, D)

    # LIF recurrence over the (small, static) time axis — fully unrolled.
    # Elementwise VPU work is slack-bound; kept simple on purpose.
    mem = jnp.zeros((T, D), jnp.float32)
    spikes = []
    for t in range(step):
        mem = mem + (y[t] - mem) * inv_tau
        fired = mem > v_threshold
        spikes.append(jnp.where(fired, 1.0, 0.0).astype(jnp.bfloat16))  # exact in bf16
        mem = jnp.where(fired, 0.0, mem)

    # Column transform: all timesteps fused into ONE (S*T, D) @ (D, D) matmul
    # (single RHS weight push, single large-M launch, one contiguous store).
    s = jnp.stack(spikes).reshape(S * T, D)
    o_ref[...] = jnp.dot(s, Kc,
                         preferred_element_type=jnp.float32).reshape(S, T, D)


def haar2d_forward(x, H, *, step=4, tau=2.0, v_threshold=1.0, tile_bc=512):
    """x: (T*B, C, N, N) f32, H: (N, N) f32 -> (T*B, C, N, N) f32."""
    TB, C, N, N2 = x.shape
    assert N == N2 and TB % step == 0
    BC = (TB // step) * C
    D = N * N

    def round_up(a, m):
        return (a + m - 1) // m * m

    # --- tile selection -------------------------------------------------
    # At least 2 grid steps (pipelining + v7x second TensorCore), prefer an
    # even count so two cores split evenly; tile sublane-aligned (mult. of 8).
    nblk = max(2, pl.cdiv(BC, tile_bc))
    if nblk % 2:
        nblk += 1
    tile = max(8, round_up(pl.cdiv(BC, nblk), 8))
    # Pad only if some block would be entirely out of bounds (tiny inputs);
    # otherwise rely on Pallas partial-block handling (no HBM pad/slice copies).
    need_pad = (nblk - 1) * tile >= BC
    BC_eff = tile * nblk if need_pad else BC

    # (T*B, C, N, N) -> (T, B*C, N*N): t slowest, images flattened lane-dense.
    xr = x.reshape(step, BC, D).astype(jnp.float32)
    if need_pad:
        xr = jnp.pad(xr, ((0, 0), (0, BC_eff - BC), (0, 0)))

    # Kronecker reformulation of the two Haar transforms on flattened images:
    #   vec(X @ H.T) = vec(X) @ kron(I, H.T)
    #   vec(H @ S)   = vec(S) @ kron(H.T, I)
    # Fed as bf16 so the MXU runs single-pass (kernel accumulates in f32).
    Hf = np.asarray(H, np.float32)
    K_row = jnp.asarray(np.kron(np.eye(N, dtype=np.float32), Hf.T), jnp.bfloat16)
    K_col = jnp.asarray(np.kron(Hf.T, np.eye(N, dtype=np.float32)), jnp.bfloat16)

    kernel = functools.partial(
        _haar2d_kernel, step=step, inv_tau=1.0 / float(tau),
        v_threshold=float(v_threshold))

    out = pl.pallas_call(
        kernel,
        out_shape=jax.ShapeDtypeStruct((step, BC_eff, D), jnp.float32),
        grid_spec=pltpu.PrefetchScalarGridSpec(
            num_scalar_prefetch=0,
            grid=(nblk,),
            in_specs=[
                pl.BlockSpec((D, D), lambda i: (0, 0)),              # K_row (resident)
                pl.BlockSpec((D, D), lambda i: (0, 0)),              # K_col (resident)
                pl.BlockSpec((step, tile, D), lambda i: (0, i, 0)),  # x tile
            ],
            out_specs=pl.BlockSpec((step, tile, D), lambda i: (0, i, 0)),
        ),
        compiler_params=pltpu.CompilerParams(
            dimension_semantics=("parallel",),
            # <= 48 MiB keeps headroom on v7x (64 MiB/TC); footprint at
            # tile_bc=512 is ~16 MiB, so v5e/v6e can also raise tile_bc.
            vmem_limit_bytes=48 << 20),
    )(K_row, K_col, xr)

    if need_pad:
        out = out[:, :BC, :]
    return out.reshape(x.shape)


# ---------------------------- pure-JAX reference -----------------------------
def haar2d_forward_ref(x, H, *, step=4, tau=2.0, v_threshold=1.0,
                       matmul_dtype=jnp.float32):
    """Module semantics; matmul_dtype selects the matmul operand precision."""
    TB, C, N, _ = x.shape
    Hm = H.astype(matmul_dtype)
    y = jnp.matmul(x.astype(matmul_dtype), Hm.T,
                   preferred_element_type=jnp.float32)
    yr = y.reshape(step, (TB // step) * C, N, N)
    mem = jnp.zeros_like(yr[0])
    spikes = []
    for t in range(step):
        mem = mem + (yr[t] - mem) / tau
        s = (mem > v_threshold).astype(jnp.float32)
        mem = mem * (1.0 - s)
        spikes.append(s)
    s = jnp.stack(spikes).reshape(TB, C, N, N)
    return jnp.matmul(Hm, s.astype(matmul_dtype),
                      preferred_element_type=jnp.float32)


# ------------------------------------ main -----------------------------------
if __name__ == "__main__":
    step = 4          # SNN timesteps (tau=2.0, v_threshold=1.0 as in __init__)
    B, C, N = 2, 4, 16
    key = jax.random.PRNGKey(0)
    x = jax.random.normal(key, (step * B, C, N, N), dtype=jnp.float32)

    H = jnp.asarray(haar_matrix(N))

    out = haar2d_forward(x, H, step=step, tau=2.0, v_threshold=1.0)
    out = jax.block_until_ready(out)
    o = np.asarray(out)

    # 1) bf16-matched reference: validates the kernel mechanics (Kron
    #    reformulation, LIF recurrence, tiling/layout) at the same matmul
    #    operand precision. Should agree except for (extremely rare)
    #    near-threshold spike flips from accumulation-order differences.
    ref_bf16 = np.asarray(haar2d_forward_ref(
        x, H, step=step, tau=2.0, v_threshold=1.0, matmul_dtype=jnp.bfloat16))
    close_bf16 = np.isclose(o, ref_bf16, rtol=2e-3, atol=2e-3)
    assert close_bf16.mean() >= 0.999, (
        f"bf16-matched reference mismatch fraction: {1.0 - close_bf16.mean():.4%}")

    # 2) f32 reference (module semantics): bf16 matmul operands can flip spikes
    #    whose membrane lands within ~1e-2 of v_threshold (inherent to a
    #    thresholded SNN under reduced matmul precision), so the bulk — not
    #    every element — must match.
    ref_f32 = np.asarray(haar2d_forward_ref(
        x, H, step=step, tau=2.0, v_threshold=1.0, matmul_dtype=jnp.float32))
    close_f32 = np.isclose(o, ref_f32, rtol=3e-2, atol=3e-2)
    assert close_f32.mean() >= 0.90, (
        f"f32 reference mismatch fraction: {1.0 - close_f32.mean():.4%}")

    print("KERNEL_OK")
</pallas_src>

<mosaic_0001>
module attributes {stable_mosaic.version = 11 : i64} {
  func.func @_haar2d_kernel(%arg0: i32, %arg1: memref<256x256xbf16, #tpu.memory_space<vmem>>, %arg2: memref<256x256xbf16, #tpu.memory_space<vmem>>, %arg3: memref<4x8x256xf32, #tpu.memory_space<vmem>>, %arg4: memref<4x8x256xf32, #tpu.memory_space<vmem>>) attributes {dimension_semantics = [#tpu.dimension_semantics<parallel>], iteration_bounds = array<i64: 2>, scalar_prefetch = 0 : i64, scratch_operands = 0 : i64, tpu.core_type = #tpu.core_type<tc>, window_params = [{pipeline_mode = #tpu.pipeline_mode<synchronous>, transform_indices = @transform_0, window_bounds = array<i64: 256, 256>}, {pipeline_mode = #tpu.pipeline_mode<synchronous>, transform_indices = @transform_1, window_bounds = array<i64: 256, 256>}, {transform_indices = @transform_2, window_bounds = array<i64: 4, 8, 256>}, {transform_indices = @transform_3, window_bounds = array<i64: 4, 8, 256>}]} {
    %c0 = arith.constant 0 : index
    %c0_0 = arith.constant 0 : index
    %0 = vector.load %arg1[%c0, %c0_0] : memref<256x256xbf16, #tpu.memory_space<vmem>>, vector<256x256xbf16>
    %c0_1 = arith.constant 0 : index
    %c0_2 = arith.constant 0 : index
    %1 = vector.load %arg2[%c0_1, %c0_2] : memref<256x256xbf16, #tpu.memory_space<vmem>>, vector<256x256xbf16>
    %c0_3 = arith.constant 0 : index
    %c0_4 = arith.constant 0 : index
    %c0_5 = arith.constant 0 : index
    %2 = vector.load %arg3[%c0_3, %c0_4, %c0_5] : memref<4x8x256xf32, #tpu.memory_space<vmem>>, vector<4x8x256xf32>
    %3 = vector.shape_cast %2 : vector<4x8x256xf32> to vector<32x256xf32>
    %4 = arith.truncf %3 : vector<32x256xf32> to vector<32x256xbf16>
    %cst = arith.constant dense<0.000000e+00> : vector<32x256xf32>
    %5 = tpu.matmul %4, %0, %cst {dimension_numbers = #tpu.dot_dimension_numbers<[1], [0], [0], [1], [0, 0, 1, 1], [], []>} : vector<32x256xbf16>, vector<256x256xbf16>, vector<32x256xf32> -> vector<32x256xf32>
    %6 = vector.shape_cast %5 : vector<32x256xf32> to vector<4x8x256xf32>
    %cst_6 = arith.constant 0.000000e+00 : f32
    %7 = vector.broadcast %cst_6 : f32 to vector<8x256xf32>
    %8 = vector.extract_strided_slice %6 {offsets = [0, 0, 0], sizes = [1, 8, 256], strides = [1, 1, 1]} : vector<4x8x256xf32> to vector<1x8x256xf32>
    %9 = vector.shape_cast %8 : vector<1x8x256xf32> to vector<8x256xf32>
    %10 = arith.subf %9, %7 : vector<8x256xf32>
    %cst_7 = arith.constant 5.000000e-01 : f32
    %11 = vector.broadcast %cst_7 : f32 to vector<8x256xf32>
    %12 = arith.mulf %10, %11 : vector<8x256xf32>
    %13 = arith.addf %7, %12 : vector<8x256xf32>
    %cst_8 = arith.constant 1.000000e+00 : f32
    %14 = vector.broadcast %cst_8 : f32 to vector<8x256xf32>
    %15 = arith.cmpf ogt, %13, %14 : vector<8x256xf32>
    %cst_9 = arith.constant 1.000000e+00 : f32
    %cst_10 = arith.constant 0.000000e+00 : f32
    %16 = vector.broadcast %cst_9 : f32 to vector<8x256xf32>
    %17 = vector.broadcast %cst_10 : f32 to vector<8x256xf32>
    %18 = arith.select %15, %16, %17 : vector<8x256xi1>, vector<8x256xf32>
    %19 = arith.truncf %18 : vector<8x256xf32> to vector<8x256xbf16>
    %cst_11 = arith.constant 0.000000e+00 : f32
    %20 = vector.broadcast %cst_11 : f32 to vector<8x256xf32>
    %21 = arith.select %15, %20, %13 : vector<8x256xi1>, vector<8x256xf32>
    %22 = vector.extract_strided_slice %6 {offsets = [1, 0, 0], sizes = [1, 8, 256], strides = [1, 1, 1]} : vector<4x8x256xf32> to vector<1x8x256xf32>
    %23 = vector.shape_cast %22 : vector<1x8x256xf32> to vector<8x256xf32>
    %24 = arith.subf %23, %21 : vector<8x256xf32>
    %cst_12 = arith.constant 5.000000e-01 : f32
    %25 = vector.broadcast %cst_12 : f32 to vector<8x256xf32>
    %26 = arith.mulf %24, %25 : vector<8x256xf32>
    %27 = arith.addf %21, %26 : vector<8x256xf32>
    %cst_13 = arith.constant 1.000000e+00 : f32
    %28 = vector.broadcast %cst_13 : f32 to vector<8x256xf32>
    %29 = arith.cmpf ogt, %27, %28 : vector<8x256xf32>
    %cst_14 = arith.constant 1.000000e+00 : f32
    %cst_15 = arith.constant 0.000000e+00 : f32
    %30 = vector.broadcast %cst_14 : f32 to vector<8x256xf32>
    %31 = vector.broadcast %cst_15 : f32 to vector<8x256xf32>
    %32 = arith.select %29, %30, %31 : vector<8x256xi1>, vector<8x256xf32>
    %33 = arith.truncf %32 : vector<8x256xf32> to vector<8x256xbf16>
    %cst_16 = arith.constant 0.000000e+00 : f32
    %34 = vector.broadcast %cst_16 : f32 to vector<8x256xf32>
    %35 = arith.select %29, %34, %27 : vector<8x256xi1>, vector<8x256xf32>
    %36 = vector.extract_strided_slice %6 {offsets = [2, 0, 0], sizes = [1, 8, 256], strides = [1, 1, 1]} : vector<4x8x256xf32> to vector<1x8x256xf32>
    %37 = vector.shape_cast %36 : vector<1x8x256xf32> to vector<8x256xf32>
    %38 = arith.subf %37, %35 : vector<8x256xf32>
    %cst_17 = arith.constant 5.000000e-01 : f32
    %39 = vector.broadcast %cst_17 : f32 to vector<8x256xf32>
    %40 = arith.mulf %38, %39 : vector<8x256xf32>
    %41 = arith.addf %35, %40 : vector<8x256xf32>
    %cst_18 = arith.constant 1.000000e+00 : f32
    %42 = vector.broadcast %cst_18 : f32 to vector<8x256xf32>
    %43 = arith.cmpf ogt, %41, %42 : vector<8x256xf32>
    %cst_19 = arith.constant 1.000000e+00 : f32
    %cst_20 = arith.constant 0.000000e+00 : f32
    %44 = vector.broadcast %cst_19 : f32 to vector<8x256xf32>
    %45 = vector.broadcast %cst_20 : f32 to vector<8x256xf32>
    %46 = arith.select %43, %44, %45 : vector<8x256xi1>, vector<8x256xf32>
    %47 = arith.truncf %46 : vector<8x256xf32> to vector<8x256xbf16>
    %cst_21 = arith.constant 0.000000e+00 : f32
    %48 = vector.broadcast %cst_21 : f32 to vector<8x256xf32>
    %49 = arith.select %43, %48, %41 : vector<8x256xi1>, vector<8x256xf32>
    %50 = vector.extract_strided_slice %6 {offsets = [3, 0, 0], sizes = [1, 8, 256], strides = [1, 1, 1]} : vector<4x8x256xf32> to vector<1x8x256xf32>
    %51 = vector.shape_cast %50 : vector<1x8x256xf32> to vector<8x256xf32>
    %52 = arith.subf %51, %49 : vector<8x256xf32>
    %cst_22 = arith.constant 5.000000e-01 : f32
    %53 = vector.broadcast %cst_22 : f32 to vector<8x256xf32>
    %54 = arith.mulf %52, %53 : vector<8x256xf32>
    %55 = arith.addf %49, %54 : vector<8x256xf32>
    %cst_23 = arith.constant 1.000000e+00 : f32
    %56 = vector.broadcast %cst_23 : f32 to vector<8x256xf32>
    %57 = arith.cmpf ogt, %55, %56 : vector<8x256xf32>
    %cst_24 = arith.constant 1.000000e+00 : f32
    %cst_25 = arith.constant 0.000000e+00 : f32
    %58 = vector.broadcast %cst_24 : f32 to vector<8x256xf32>
    %59 = vector.broadcast %cst_25 : f32 to vector<8x256xf32>
    %60 = arith.select %57, %58, %59 : vector<8x256xi1>, vector<8x256xf32>
    %61 = arith.truncf %60 : vector<8x256xf32> to vector<8x256xbf16>
    %62 = vector.shape_cast %19 : vector<8x256xbf16> to vector<1x8x256xbf16>
    %63 = vector.shape_cast %33 : vector<8x256xbf16> to vector<1x8x256xbf16>
    %64 = vector.shape_cast %47 : vector<8x256xbf16> to vector<1x8x256xbf16>
    %65 = vector.shape_cast %61 : vector<8x256xbf16> to vector<1x8x256xbf16>
    %66 = tpu.concatenate %62, %63, %64, %65 in 0 : vector<1x8x256xbf16>, vector<1x8x256xbf16>, vector<1x8x256xbf16>, vector<1x8x256xbf16> -> vector<4x8x256xbf16>
    %67 = vector.shape_cast %66 : vector<4x8x256xbf16> to vector<32x256xbf16>
    %cst_26 = arith.constant dense<0.000000e+00> : vector<32x256xf32>
    %68 = tpu.matmul %67, %1, %cst_26 {dimension_numbers = #tpu.dot_dimension_numbers<[1], [0], [0], [1], [0, 0, 1, 1], [], []>} : vector<32x256xbf16>, vector<256x256xbf16>, vector<32x256xf32> -> vector<32x256xf32>
    %69 = vector.shape_cast %68 : vector<32x256xf32> to vector<4x8x256xf32>
    %c0_27 = arith.constant 0 : index
    %c0_28 = arith.constant 0 : index
    %c0_29 = arith.constant 0 : index
    %70 = vector.load %arg4[%c0_27, %c0_28, %c0_29] : memref<4x8x256xf32, #tpu.memory_space<vmem>>, vector<4x8x256xf32>
    tpu.vector_store %arg4[%c0_27, %c0_28, %c0_29], %69 {strides = array<i32>} : memref<4x8x256xf32, #tpu.memory_space<vmem>>, vector<4x8x256xf32>,
    return
  }
  func.func @transform_0(%arg0: i32) -> (i32, i32) {
    %c0_i32 = arith.constant 0 : i32
    %c0_i32_0 = arith.constant 0 : i32
    %c0_i32_1 = arith.constant 0 : i32
    return %c0_i32, %c0_i32_0 : i32, i32
  }
  func.func @transform_1(%arg0: i32) -> (i32, i32) {
    %c0_i32 = arith.constant 0 : i32
    %c0_i32_0 = arith.constant 0 : i32
    %c0_i32_1 = arith.constant 0 : i32
    return %c0_i32, %c0_i32_0 : i32, i32
  }
  func.func @transform_2(%arg0: i32) -> (i32, i32, i32) {
    %c0_i32 = arith.constant 0 : i32
    %c0_i32_0 = arith.constant 0 : i32
    %c0_i32_1 = arith.constant 0 : i32
    return %c0_i32, %arg0, %c0_i32_0 : i32, i32, i32
  }
  func.func @transform_3(%arg0: i32) -> (i32, i32, i32) {
    %c0_i32 = arith.constant 0 : i32
    %c0_i32_0 = arith.constant 0 : i32
    %c0_i32_1 = arith.constant 0 : i32
    return %c0_i32, %arg0, %c0_i32_0 : i32, i32, i32
  }
}

</mosaic_0001>

<llo_original>
// kernel: tpu_custom_call.1
$region0: #{tpu_custom_call.1}
  #allocation0 [shape = 'u32[]', space=smem, size = 0x4, offset = 0x4, fixed_abs, tag = 'smem constant byte address 0x4 - core index']
  #allocation1 [shape = 'u32[72,128]{1,0:T(1,128)}', space=vmem, size = 0x9000, scoped, tag = 'internal scratch']
  %s0 = inlined_call_operand.hbm [shape: bf16[256,256], index: 0, kind: input, shape index: {}]
  %s1 = inlined_call_operand.hbm [shape: bf16[256,256], index: 1, kind: input, shape index: {}]
  %s2 = inlined_call_operand.hbm [shape: f32[4,16,256], index: 2, kind: input, shape index: {}]
  %s3 = inlined_call_operand.hbm [shape: f32[4,16,256], index: 3, kind: output, shape index: {}]
  %s4 = sld [smem:[#allocation0]]
  $region57: #{tpu_custom_call.1} parent=0
    _
  %s6 = ssub.s32 1, %s4
  %s7 = scalar_select 0, %s6, %s4
  $region1: #{tpu_custom_call.1} parent=0
    #allocation2 [shape = 'u8[131072]{0}', space=vmem, size = 0x20000, scoped, tag = 'input window, operand 0, single buffered']
    #allocation3 [shape = 's32[2]{0}', space=sflag, size = 0x8, scoped, tag = 'scoped memory for tpu_custom_call.1']
    #allocation4 [shape = 's32[2]{0}', space=sflag, size = 0x8, scoped, tag = 'scoped memory for tpu_custom_call.1']
    #allocation5 [shape = 'u8[131072]{0}', space=vmem, size = 0x20000, scoped, tag = 'input window, operand 1, single buffered']
    #allocation6 [shape = 's32[1]{0}', space=sflag, size = 0x4, scoped, tag = 'scoped memory for tpu_custom_call.1']
    #allocation7 [shape = 'u8[65536]{0}', space=vmem, size = 0x10000, scoped, tag = 'input window, operand 2']
    #allocation8 [shape = 'u8[65536]{0}', space=vmem, size = 0x10000, scoped, tag = 'output window, operand 0']
    %8 = vsyncpa [#allocation3], 0
    %9 = vsyncpa [#allocation6], 0
    %10 = vsyncpa [#allocation4], 0
    %s11 = scalar_lea.sflag [#allocation4], 1
    %12 = vsyncpa %s11, 0
    loop: start=0, step=1, limit=4
    $region2: #{tpu_custom_call.1} parent=1 // loop_pre_header
      _
    $region3: #{tpu_custom_call.1} parent=1 // loop_header
      %s14 = sphi 0, %s18
      %p15 = scmp.ge.s32.totalorder %s14, 4
      %s22 = sphi 0, %s22
      %s24 = sphi 0, %s22
      %s25 = sphi 0, %s24
      %s39 = sphi 0, %s25
      %s43 = sphi 0, %s43
      %s45 = sphi 0, %s43
      %s46 = sphi 0, %s45
      %s60 = sphi 0, %s46
      %s66 = sphi 0, %s68
      %s69 = sphi 0, %s66
      %s70 = sphi 0, %s69
      %s86 = sphi 0, %s70
      %s92 = sphi 0, %s94
      %s95 = sphi 0, %s92
      %s96 = sphi 0, %s95
      %s112 = sphi 0, %s96
    $region4: #{tpu_custom_call.1} parent=1 // loop_header_branch
      %17 = sbr.rel (%p15) target = $region8
    $region5: #{tpu_custom_call.1} parent=1 // loop_body
      %s19 = ssub.s32 %s14, 1
      %s20 = ssub.s32 %s14, 2
      %s21 = sadd.s32 %s14, 1
      %s23 = sadd.s32 %s22, 1
      %p26 = scmp.eq.s32.totalorder %s14, 1
      %p27 = scmp.ne.s32.totalorder %s22, %s24
      %p28 = scmp.eq.s32.totalorder %s14, 0
      %p29 = por %p27, %p28
      %p30 = scmp.ne.s32.totalorder %s22, %s24
      %p31 = scmp.eq.s32.totalorder %s19, 1
      %p32 = por %p30, %p31
      %p33 = scmp.ne.s32.totalorder %s24, %s25
      %p34 = scmp.eq.s32.totalorder %s19, 0
      %p35 = por %p33, %p34
      %p36 = scmp.ne.s32.totalorder %s24, %s25
      %p37 = scmp.eq.s32.totalorder %s20, 1
      %p38 = por %p36, %p37
      %p40 = scmp.ne.s32.totalorder %s25, %s39
      %p41 = scmp.eq.s32.totalorder %s20, 0
      %p42 = por %p40, %p41
      %s44 = sadd.s32 %s43, 1
      %p47 = scmp.eq.s32.totalorder %s14, 1
      %p48 = scmp.ne.s32.totalorder %s43, %s45
      %p49 = scmp.eq.s32.totalorder %s14, 0
      %p50 = por %p48, %p49
      %p51 = scmp.ne.s32.totalorder %s43, %s45
      %p52 = scmp.eq.s32.totalorder %s19, 1
      %p53 = por %p51, %p52
      %p54 = scmp.ne.s32.totalorder %s45, %s46
      %p55 = scmp.eq.s32.totalorder %s19, 0
      %p56 = por %p54, %p55
      %p57 = scmp.ne.s32.totalorder %s45, %s46
      %p58 = scmp.eq.s32.totalorder %s20, 1
      %p59 = por %p57, %p58
      %p61 = scmp.ne.s32.totalorder %s46, %s60
      %p62 = scmp.eq.s32.totalorder %s20, 0
      %p63 = por %p61, %p62
      %s64 = ssub.s32 %s14, %s21
      %p65 = scmp.eq.s32.totalorder %s64, 0
      %s67 = sadd.s32 %s66, 1
      %s68 = scalar_select %p65, %s66, %s67
      %p71 = pneg %p65
      %p72 = scmp.eq.s32.totalorder %s14, 1
      %p73 = por %p71, %p72
      %p74 = scmp.ne.s32.totalorder %s66, %s69
      %p75 = scmp.eq.s32.totalorder %s14, 0
      %p76 = por %p74, %p75
      %p77 = scmp.ne.s32.totalorder %s66, %s69
      %p78 = scmp.eq.s32.totalorder %s19, 1
      %p79 = por %p77, %p78
      %p80 = scmp.ne.s32.totalorder %s69, %s70
      %p81 = scmp.eq.s32.totalorder %s19, 0
      %p82 = por %p80, %p81
      %p83 = scmp.ne.s32.totalorder %s69, %s70
      %p84 = scmp.eq.s32.totalorder %s20, 1
      %p85 = por %p83, %p84
      %p87 = scmp.ne.s32.totalorder %s70, %s86
      %p88 = scmp.eq.s32.totalorder %s20, 0
      %p89 = por %p87, %p88
      %s90 = ssub.s32 %s14, %s21
      %p91 = scmp.eq.s32.totalorder %s90, 0
      %s93 = sadd.s32 %s92, 1
      %s94 = scalar_select %p91, %s92, %s93
      %p97 = pneg %p91
      %p98 = scmp.eq.s32.totalorder %s14, 1
      %p99 = por %p97, %p98
      %p100 = scmp.ne.s32.totalorder %s92, %s95
      %p101 = scmp.eq.s32.totalorder %s14, 0
      %p102 = por %p100, %p101
      %p103 = scmp.ne.s32.totalorder %s92, %s95
      %p104 = scmp.eq.s32.totalorder %s19, 1
      %p105 = por %p103, %p104
      %p106 = scmp.ne.s32.totalorder %s95, %s96
      %p107 = scmp.eq.s32.totalorder %s19, 0
      %p108 = por %p106, %p107
      %p109 = scmp.ne.s32.totalorder %s95, %s96
      %p110 = scmp.eq.s32.totalorder %s20, 1
      %p111 = por %p109, %p110
      %p113 = scmp.ne.s32.totalorder %s96, %s112
      %p114 = scmp.eq.s32.totalorder %s20, 0
      %p115 = por %p113, %p114
      %p116 = scmp.le.s32.totalorder 1, %s14
      %p117 = scmp.lt.s32.totalorder %s14, 3
      %p118 = pnand %p116, %p117
      %p119 = pneg %p118
      // Predicated region
      $region9: #{tpu_custom_call.1} parent=5 // pred_check
        _
      $region10: #{tpu_custom_call.1} parent=5 // pred_check_branch
        %121 = sbr.rel (%p118) target = $region12
      $region11: #{tpu_custom_call.1} parent=5 // pred_region
        %s122 = ssub.s32 %s14, 1
        // Predicated region
        $region13: #{tpu_custom_call.1} parent=11 // pred_check
          %p123 = pneg %p35
        $region14: #{tpu_custom_call.1} parent=11 // pred_check_branch
          %125 = sbr.rel (%p123) target = $region16
        $region15: #{tpu_custom_call.1} parent=11 // pred_region
          %127 = vsyncadd [#allocation3], 0
          %s128 = sshll.u32 %s0, 4
          %s129 = int_to_ptr.hbm [resolvable:$true] %s128
          %s130 = sshll.u32 [#allocation2], 4
          %s131 = int_to_ptr.vmem [resolvable:$true] %s130
          %136 = dma.hbm_to_vmem [thread:$0]  %s129, 4096, %s131, [#allocation3], 128, 128, 8
        $region16: #{tpu_custom_call.1} parent=11 // pred_fallthru
          _
        // Predicated region
        $region17: #{tpu_custom_call.1} parent=11 // pred_check
          %p137 = pneg %p56
        $region18: #{tpu_custom_call.1} parent=11 // pred_check_branch
          %139 = sbr.rel (%p137) target = $region20
        $region19: #{tpu_custom_call.1} parent=11 // pred_region
          %141 = vsyncadd [#allocation6], 0
          %s142 = sshll.u32 %s1, 4
          %s143 = int_to_ptr.hbm [resolvable:$true] %s142
          %s144 = sshll.u32 [#allocation5], 4
          %s145 = int_to_ptr.vmem [resolvable:$true] %s144
          %150 = dma.hbm_to_vmem [thread:$0]  %s143, 4096, %s145, [#allocation6], 128, 128, 8
        $region20: #{tpu_custom_call.1} parent=11 // pred_fallthru
          _
      $region12: #{tpu_custom_call.1} parent=5 // pred_fallthru
        _
      %p151 = scmp.lt.s32.totalorder %s14, 2
      // Predicated region
      $region21: #{tpu_custom_call.1} parent=5 // pred_check
        %p152 = pneg %p151
      $region22: #{tpu_custom_call.1} parent=5 // pred_check_branch
        %154 = sbr.rel (%p152) target = $region24
      $region23: #{tpu_custom_call.1} parent=5 // pred_region
        // Predicated region
        $region25: #{tpu_custom_call.1} parent=23 // pred_check
          %p155 = pneg %p76
        $region26: #{tpu_custom_call.1} parent=23 // pred_check_branch
          %157 = sbr.rel (%p155) target = $region28
        $region27: #{tpu_custom_call.1} parent=23 // pred_region
          %s158 = sand.u32 %s14, 1
          %s159 = scalar_lea.sflag [#allocation3], %s158
          %s160 = sand.u32 %s66, 1
          %s161 = smul.addr %s160, 64
          %s162 = scalar_lea.vmem [#allocation7], %s161
          %164 = vsyncadd %s159, 0
          %s165 = smul.addr %s14, 2
          %s166 = smul.addr %s165, 8
          %s167 = scalar_lea.hbm %s2, %s166
          %s168 = sshll.u32 %s167, 4
          %s169 = int_to_ptr.hbm [resolvable:$true] %s168
          %s170 = sshll.u32 %s162, 4
          %s171 = int_to_ptr.vmem [resolvable:$true] %s170
          %176 = dma.hbm_to_vmem [thread:$0]  %s169, 1024, %s171, %s159, 512, 256, 16
        $region28: #{tpu_custom_call.1} parent=23 // pred_fallthru
          _
      $region24: #{tpu_custom_call.1} parent=5 // pred_fallthru
        _
      %p177 = scmp.le.s32.totalorder 1, %s14
      %p178 = scmp.lt.s32.totalorder %s14, 3
      %p179 = pnand %p177, %p178
      %p180 = pneg %p179
      // Predicated region
      $region29: #{tpu_custom_call.1} parent=5 // pred_check
        _
      $region30: #{tpu_custom_call.1} parent=5 // pred_check_branch
        %182 = sbr.rel (%p179) target = $region32
      $region31: #{tpu_custom_call.1} parent=5 // pred_region
        %s183 = ssub.s32 %s14, 1
        // Predicated region
        $region33: #{tpu_custom_call.1} parent=31 // pred_check
          %p184 = pneg %p35
        $region34: #{tpu_custom_call.1} parent=31 // pred_check_branch
          %186 = sbr.rel (%p184) target = $region36
        $region35: #{tpu_custom_call.1} parent=31 // pred_region
          %188 = dma.done [#allocation3], 4096
        $region36: #{tpu_custom_call.1} parent=31 // pred_fallthru
          _
        // Predicated region
        $region37: #{tpu_custom_call.1} parent=31 // pred_check
          %p189 = pneg %p56
        $region38: #{tpu_custom_call.1} parent=31 // pred_check_branch
          %191 = sbr.rel (%p189) target = $region40
        $region39: #{tpu_custom_call.1} parent=31 // pred_region
          %193 = dma.done [#allocation6], 4096
        $region40: #{tpu_custom_call.1} parent=31 // pred_fallthru
          _
        %s194 = sand.u32 %s19, 1
        %s195 = scalar_lea.sflag [#allocation3], %s194
        %s196 = sand.u32 %s69, 1
        %s197 = smul.addr %s196, 64
        %s198 = scalar_lea.vmem [#allocation7], %s197
        // Predicated region
        $region41: #{tpu_custom_call.1} parent=31 // pred_check
          %p199 = pneg %p82
        $region42: #{tpu_custom_call.1} parent=31 // pred_check_branch
          %201 = sbr.rel (%p199) target = $region44
        $region43: #{tpu_custom_call.1} parent=31 // pred_region
          %203 = dma.done %s195, 1024
        $region44: #{tpu_custom_call.1} parent=31 // pred_fallthru
          _
        %p204 = pneg %p35
        %p205 = pneg %p32
        %p206 = pneg %p56
        %p207 = pneg %p53
        %s208 = sand.u32 %s19, 1
        %s209 = scalar_lea.sflag [#allocation3], %s208
        %s210 = sand.u32 %s69, 1
        %s211 = smul.addr %s210, 64
        %s212 = scalar_lea.vmem [#allocation7], %s211
        %p213 = pneg %p82
        %p214 = pneg %p79
        %p215 = pneg %p108
        %p216 = pneg %p105
        %s217 = sand.u32 %s95, 1
        %s218 = scalar_lea.sflag [#allocation4], %s217
        %s219 = sand.u32 %s95, 1
        %s220 = smul.addr %s219, 64
        %s221 = scalar_lea.vmem [#allocation8], %s220
        %v222 = vld [vmem:[#allocation2] sm:$0xff]
        %v223 = vld [vmem:[#allocation2 + $0x8] sm:$0xff]
        %v224 = vld [vmem:[#allocation2 + $0x10] sm:$0xff]
        %v225 = vld [vmem:[#allocation2 + $0x18] sm:$0xff]
        %v226 = vld [vmem:[#allocation2 + $0x20] sm:$0xff]
        %v227 = vld [vmem:[#allocation2 + $0x28] sm:$0xff]
        %v228 = vld [vmem:[#allocation2 + $0x30] sm:$0xff]
        %v229 = vld [vmem:[#allocation2 + $0x38] sm:$0xff]
        %v230 = vld [vmem:[#allocation2 + $0x40] sm:$0xff]
        %v231 = vld [vmem:[#allocation2 + $0x48] sm:$0xff]
        %v232 = vld [vmem:[#allocation2 + $0x50] sm:$0xff]
        %v233 = vld [vmem:[#allocation2 + $0x58] sm:$0xff]
        %v234 = vld [vmem:[#allocation2 + $0x60] sm:$0xff]
        %v235 = vld [vmem:[#allocation2 + $0x68] sm:$0xff]
        %v236 = vld [vmem:[#allocation2 + $0x70] sm:$0xff]
        %v237 = vld [vmem:[#allocation2 + $0x78] sm:$0xff]
        %v238 = vld [vmem:[#allocation2 + $0x80] sm:$0xff]
        %v239 = vld [vmem:[#allocation2 + $0x88] sm:$0xff]
        %v240 = vld [vmem:[#allocation2 + $0x90] sm:$0xff]
        %v241 = vld [vmem:[#allocation2 + $0x98] sm:$0xff]
        %v242 = vld [vmem:[#allocation2 + $0xa0] sm:$0xff]
        %v243 = vld [vmem:[#allocation2 + $0xa8] sm:$0xff]
        %v244 = vld [vmem:[#allocation2 + $0xb0] sm:$0xff]
        %v245 = vld [vmem:[#allocation2 + $0xb8] sm:$0xff]
        %v246 = vld [vmem:[#allocation2 + $0xc0] sm:$0xff]
        %v247 = vld [vmem:[#allocation2 + $0xc8] sm:$0xff]
        %v248 = vld [vmem:[#allocation2 + $0xd0] sm:$0xff]
        %v249 = vld [vmem:[#allocation2 + $0xd8] sm:$0xff]
        %v250 = vld [vmem:[#allocation2 + $0xe0] sm:$0xff]
        %v251 = vld [vmem:[#allocation2 + $0xe8] sm:$0xff]
        %v252 = vld [vmem:[#allocation2 + $0xf0] sm:$0xff]
        %v253 = vld [vmem:[#allocation2 + $0xf8] sm:$0xff]
        %v254 = vld [vmem:[#allocation5] sm:$0xff]
        %v255 = vld [vmem:[#allocation5 + $0x8] sm:$0xff]
        %v256 = vld [vmem:[#allocation5 + $0x10] sm:$0xff]
        %v257 = vld [vmem:[#allocation5 + $0x18] sm:$0xff]
        %v258 = vld [vmem:[#allocation5 + $0x20] sm:$0xff]
        %v259 = vld [vmem:[#allocation5 + $0x28] sm:$0xff]
        %v260 = vld [vmem:[#allocation5 + $0x30] sm:$0xff]
        %v261 = vld [vmem:[#allocation5 + $0x38] sm:$0xff]
        %v262 = vld [vmem:[#allocation5 + $0x40] sm:$0xff]
        %v263 = vld [vmem:[#allocation5 + $0x48] sm:$0xff]
        %v264 = vld [vmem:[#allocation5 + $0x50] sm:$0xff]
        %v265 = vld [vmem:[#allocation5 + $0x58] sm:$0xff]
        %v266 = vld [vmem:[#allocation5 + $0x60] sm:$0xff]
        %v267 = vld [vmem:[#allocation5 + $0x68] sm:$0xff]
        %v268 = vld [vmem:[#allocation5 + $0x70] sm:$0xff]
        %v269 = vld [vmem:[#allocation5 + $0x78] sm:$0xff]
        %v270 = vld [vmem:[#allocation5 + $0x80] sm:$0xff]
        %v271 = vld [vmem:[#allocation5 + $0x88] sm:$0xff]
        %v272 = vld [vmem:[#allocation5 + $0x90] sm:$0xff]
        %v273 = vld [vmem:[#allocation5 + $0x98] sm:$0xff]
        %v274 = vld [vmem:[#allocation5 + $0xa0] sm:$0xff]
        %v275 = vld [vmem:[#allocation5 + $0xa8] sm:$0xff]
        %v276 = vld [vmem:[#allocation5 + $0xb0] sm:$0xff]
        %v277 = vld [vmem:[#allocation5 + $0xb8] sm:$0xff]
        %v278 = vld [vmem:[#allocation5 + $0xc0] sm:$0xff]
        %v279 = vld [vmem:[#allocation5 + $0xc8] sm:$0xff]
        %v280 = vld [vmem:[#allocation5 + $0xd0] sm:$0xff]
        %v281 = vld [vmem:[#allocation5 + $0xd8] sm:$0xff]
        %v282 = vld [vmem:[#allocation5 + $0xe0] sm:$0xff]
        %v283 = vld [vmem:[#allocation5 + $0xe8] sm:$0xff]
        %v284 = vld [vmem:[#allocation5 + $0xf0] sm:$0xff]
        %v285 = vld [vmem:[#allocation5 + $0xf8] sm:$0xff]
        %v286 = vld [vmem:[%s198] sm:$0xff]
        %v287 = vld [vmem:[%s198 + $0x8] sm:$0xff]
        %v288 = vld [vmem:[%s198 + $0x10] sm:$0xff]
        %v289 = vld [vmem:[%s198 + $0x18] sm:$0xff]
        %v290 = vld [vmem:[%s198 + $0x20] sm:$0xff]
        %v291 = vld [vmem:[%s198 + $0x28] sm:$0xff]
        %v292 = vld [vmem:[%s198 + $0x30] sm:$0xff]
        %v293 = vld [vmem:[%s198 + $0x38] sm:$0xff]
        %v294 = vpack.c.bf16 %v288, %v286
        %v295 = vpack.c.bf16 %v289, %v287
        %v296 = vpack.c.bf16 %v292, %v290
        %v297 = vpack.c.bf16 %v293, %v291
        %v330 = vunpack.c.l.b16 %v222
        %v331 = vunpack.c.h.b16 %v222
        %v332 = vunpack.c.l.b16 %v223
        %v333 = vunpack.c.h.b16 %v223
        %v334 = vunpack.c.l.b16 %v224
        %v335 = vunpack.c.h.b16 %v224
        %v336 = vunpack.c.l.b16 %v225
        %v337 = vunpack.c.h.b16 %v225
        %v338 = vunpack.c.l.b16 %v226
        %v339 = vunpack.c.h.b16 %v226
        %v340 = vunpack.c.l.b16 %v227
        %v341 = vunpack.c.h.b16 %v227
        %v342 = vunpack.c.l.b16 %v228
        %v343 = vunpack.c.h.b16 %v228
        %v344 = vunpack.c.l.b16 %v229
        %v345 = vunpack.c.h.b16 %v229
        %v346 = vunpack.c.l.b16 %v230
        %v347 = vunpack.c.h.b16 %v230
        %v348 = vunpack.c.l.b16 %v231
        %v349 = vunpack.c.h.b16 %v231
        %v350 = vunpack.c.l.b16 %v232
        %v351 = vunpack.c.h.b16 %v232
        %v352 = vunpack.c.l.b16 %v233
        %v353 = vunpack.c.h.b16 %v233
        %v354 = vunpack.c.l.b16 %v234
        %v355 = vunpack.c.h.b16 %v234
        %v356 = vunpack.c.l.b16 %v235
        %v357 = vunpack.c.h.b16 %v235
        %v358 = vunpack.c.l.b16 %v236
        %v359 = vunpack.c.h.b16 %v236
        %v360 = vunpack.c.l.b16 %v237
        %v361 = vunpack.c.h.b16 %v237
        %v362 = vunpack.c.l.b16 %v238
        %v363 = vunpack.c.h.b16 %v238
        %v364 = vunpack.c.l.b16 %v239
        %v365 = vunpack.c.h.b16 %v239
        %v366 = vunpack.c.l.b16 %v240
        %v367 = vunpack.c.h.b16 %v240
        %v368 = vunpack.c.l.b16 %v241
        %v369 = vunpack.c.h.b16 %v241
        %v370 = vunpack.c.l.b16 %v242
        %v371 = vunpack.c.h.b16 %v242
        %v372 = vunpack.c.l.b16 %v243
        %v373 = vunpack.c.h.b16 %v243
        %v374 = vunpack.c.l.b16 %v244
        %v375 = vunpack.c.h.b16 %v244
        %v376 = vunpack.c.l.b16 %v245
        %v377 = vunpack.c.h.b16 %v245
        %v378 = vunpack.c.l.b16 %v246
        %v379 = vunpack.c.h.b16 %v246
        %v380 = vunpack.c.l.b16 %v247
        %v381 = vunpack.c.h.b16 %v247
        %v382 = vunpack.c.l.b16 %v248
        %v383 = vunpack.c.h.b16 %v248
        %v384 = vunpack.c.l.b16 %v249
        %v385 = vunpack.c.h.b16 %v249
        %v386 = vunpack.c.l.b16 %v250
        %v387 = vunpack.c.h.b16 %v250
        %v388 = vunpack.c.l.b16 %v251
        %v389 = vunpack.c.h.b16 %v251
        %v390 = vunpack.c.l.b16 %v252
        %v391 = vunpack.c.h.b16 %v252
        %v392 = vunpack.c.l.b16 %v253
        %v393 = vunpack.c.h.b16 %v253
        %v394 = vpack.c.b16 %v332, %v330
        %v395 = vpack.c.b16 %v333, %v331
        %v396 = vpack.c.b16 %v336, %v334
        %v397 = vpack.c.b16 %v337, %v335
        %v398 = vpack.c.b16 %v340, %v338
        %v399 = vpack.c.b16 %v341, %v339
        %v400 = vpack.c.b16 %v344, %v342
        %v401 = vpack.c.b16 %v345, %v343
        %v402 = vpack.c.b16 %v348, %v346
        %v403 = vpack.c.b16 %v349, %v347
        %v404 = vpack.c.b16 %v352, %v350
        %v405 = vpack.c.b16 %v353, %v351
        %v406 = vpack.c.b16 %v356, %v354
        %v407 = vpack.c.b16 %v357, %v355
        %v408 = vpack.c.b16 %v360, %v358
        %v409 = vpack.c.b16 %v361, %v359
        %v410 = vpack.c.b16 %v364, %v362
        %v411 = vpack.c.b16 %v365, %v363
        %v412 = vpack.c.b16 %v368, %v366
        %v413 = vpack.c.b16 %v369, %v367
        %v414 = vpack.c.b16 %v372, %v370
        %v415 = vpack.c.b16 %v373, %v371
        %v416 = vpack.c.b16 %v376, %v374
        %v417 = vpack.c.b16 %v377, %v375
        %v418 = vpack.c.b16 %v380, %v378
        %v419 = vpack.c.b16 %v381, %v379
        %v420 = vpack.c.b16 %v384, %v382
        %v421 = vpack.c.b16 %v385, %v383
        %v422 = vpack.c.b16 %v388, %v386
        %v423 = vpack.c.b16 %v389, %v387
        %v424 = vpack.c.b16 %v392, %v390
        %v425 = vpack.c.b16 %v393, %v391
        %458 = vmatpush.bf16.msra.mxu0 %v408
        %459 = vmatpush.bf16.msra.mxu0 %v406
        %460 = vmatpush.bf16.msra.mxu0 %v404
        %461 = vmatpush.bf16.msra.mxu0 %v402
        %462 = vmatpush.bf16.msra.mxu0 %v400
        %463 = vmatpush.bf16.msra.mxu0 %v398
        %464 = vmatpush.bf16.msra.mxu0 %v396
        %465 = vmatpush.bf16.msra.mxu0 %v394
        %466 = vmatmul.bf16.gmra.mxu0 %v294
        %v467 = vpop.f32.mrf.mxu0
        %v468 = vadd.f32 0.0, %v467
        %v469 = vpop.f32.mrf.mxu0
        %v470 = vadd.f32 0.0, %v469
        %471 = vmatmul.bf16.gmra.mxu0 %v296
        %v472 = vpop.f32.mrf.mxu0
        %v473 = vadd.f32 0.0, %v472
        %v474 = vpop.f32.mrf.mxu0
        %v475 = vadd.f32 0.0, %v474
        %476 = vdwg.mxu0
        %477 = vmatpush.bf16.msra.mxu0 %v424
        %478 = vmatpush.bf16.msra.mxu0 %v422
        %479 = vmatpush.bf16.msra.mxu0 %v420
        %480 = vmatpush.bf16.msra.mxu0 %v418
        %481 = vmatpush.bf16.msra.mxu0 %v416
        %482 = vmatpush.bf16.msra.mxu0 %v414
        %483 = vmatpush.bf16.msra.mxu0 %v412
        %484 = vmatpush.bf16.msra.mxu0 %v410
        %485 = vmatmul.bf16.gmra.mxu0 %v295
        %v486 = vpop.f32.mrf.mxu0
        %v487 = vadd.f32 %v468, %v486
        %v488 = vpop.f32.mrf.mxu0
        %v489 = vadd.f32 %v470, %v488
        %490 = vmatmul.bf16.gmra.mxu0 %v297
        %v491 = vpop.f32.mrf.mxu0
        %v492 = vadd.f32 %v473, %v491
        %v493 = vpop.f32.mrf.mxu0
        %v494 = vadd.f32 %v475, %v493
        %495 = vdwg.mxu0
        %496 = vmatpush.bf16.msra.mxu0 %v409
        %497 = vmatpush.bf16.msra.mxu0 %v407
        %498 = vmatpush.bf16.msra.mxu0 %v405
        %499 = vmatpush.bf16.msra.mxu0 %v403
        %500 = vmatpush.bf16.msra.mxu0 %v401
        %501 = vmatpush.bf16.msra.mxu0 %v399
        %502 = vmatpush.bf16.msra.mxu0 %v397
        %503 = vmatpush.bf16.msra.mxu0 %v395
        %504 = vmatmul.bf16.gmra.mxu0 %v294
        %v505 = vpop.f32.mrf.mxu0
        %v506 = vadd.f32 0.0, %v505
        %v507 = vpop.f32.mrf.mxu0
        %v508 = vadd.f32 0.0, %v507
        %509 = vmatmul.bf16.gmra.mxu0 %v296
        %v510 = vpop.f32.mrf.mxu0
        %v511 = vadd.f32 0.0, %v510
        %v512 = vpop.f32.mrf.mxu0
        %v513 = vadd.f32 0.0, %v512
        %514 = vdwg.mxu0
        %515 = vmatpush.bf16.msra.mxu0 %v425
        %516 = vmatpush.bf16.msra.mxu0 %v423
        %517 = vmatpush.bf16.msra.mxu0 %v421
        %518 = vmatpush.bf16.msra.mxu0 %v419
        %519 = vmatpush.bf16.msra.mxu0 %v417
        %520 = vmatpush.bf16.msra.mxu0 %v415
        %521 = vmatpush.bf16.msra.mxu0 %v413
        %522 = vmatpush.bf16.msra.mxu0 %v411
        %523 = vmatmul.bf16.gmra.mxu0 %v295
        %v524 = vpop.f32.mrf.mxu0
        %v525 = vadd.f32 %v506, %v524
        %v526 = vpop.f32.mrf.mxu0
        %v527 = vadd.f32 %v508, %v526
        %528 = vmatmul.bf16.gmra.mxu0 %v297
        %v529 = vpop.f32.mrf.mxu0
        %v530 = vadd.f32 %v511, %v529
        %v531 = vpop.f32.mrf.mxu0
        %v532 = vadd.f32 %v513, %v531
        %533 = vdwg.mxu0
        %v534 = vmul.f32 %v487, 0.5
        %v535 = vmul.f32 %v525, 0.5
        %v536 = vadd.f32 %v534, 0.0
        %v537 = vadd.f32 %v535, 0.0
        %vm538 = vcmp.gt.f32.partialorder %v536, 1.0
        %vm539 = vcmp.gt.f32.partialorder %v537, 1.0
        %v540 = vsel %vm538, 1.0, 0.0
        %v541 = vsel %vm539, 1.0, 0.0
        %v542 = vpack.c.bf16 %v541, %v540
        %v543 = vsel %vm538, 0.0, %v536
        %v544 = vsel %vm539, 0.0, %v537
        %v545 = vsub.f32 %v489, %v543
        %v546 = vsub.f32 %v527, %v544
        %v547 = vmul.f32 %v545, 0.5
        %v548 = vmul.f32 %v546, 0.5
        %v549 = vadd.f32 %v543, %v547
        %v550 = vadd.f32 %v544, %v548
        %vm551 = vcmp.gt.f32.partialorder %v549, 1.0
        %vm552 = vcmp.gt.f32.partialorder %v550, 1.0
        %v553 = vsel %vm551, 1.0, 0.0
        %v554 = vsel %vm552, 1.0, 0.0
        %v555 = vpack.c.bf16 %v554, %v553
        %v556 = vsel %vm551, 0.0, %v549
        %v557 = vsel %vm552, 0.0, %v550
        %v558 = vsub.f32 %v492, %v556
        %v559 = vsub.f32 %v530, %v557
        %v560 = vmul.f32 %v558, 0.5
        %v561 = vmul.f32 %v559, 0.5
        %v562 = vadd.f32 %v556, %v560
        %v563 = vadd.f32 %v557, %v561
        %vm564 = vcmp.gt.f32.partialorder %v562, 1.0
        %vm565 = vcmp.gt.f32.partialorder %v563, 1.0
        %v566 = vsel %vm564, 1.0, 0.0
        %v567 = vsel %vm565, 1.0, 0.0
        %v568 = vpack.c.bf16 %v567, %v566
        %v569 = vsel %vm564, 0.0, %v562
        %v570 = vsel %vm565, 0.0, %v563
        %v571 = vsub.f32 %v494, %v569
        %v572 = vsub.f32 %v532, %v570
        %v573 = vmul.f32 %v571, 0.5
        %v574 = vmul.f32 %v572, 0.5
        %v575 = vadd.f32 %v569, %v573
        %v576 = vadd.f32 %v570, %v574
        %vm577 = vcmp.gt.f32.partialorder %v575, 1.0
        %vm578 = vcmp.gt.f32.partialorder %v576, 1.0
        %v579 = vsel %vm577, 1.0, 0.0
        %v580 = vsel %vm578, 1.0, 0.0
        %v581 = vpack.c.bf16 %v580, %v579
        %v586 = vunpack.c.l.b16 %v542
        %v587 = vunpack.c.h.b16 %v542
        %v588 = vunpack.c.l.b16 %v555
        %v589 = vunpack.c.h.b16 %v555
        %v590 = vunpack.c.l.b16 %v568
        %v591 = vunpack.c.h.b16 %v568
        %v592 = vunpack.c.l.b16 %v581
        %v593 = vunpack.c.h.b16 %v581
        %v594 = vpack.c.b16 %v588, %v586
        %v595 = vpack.c.b16 %v589, %v587
        %v596 = vpack.c.b16 %v592, %v590
        %v597 = vpack.c.b16 %v593, %v591
        %v634 = vunpack.c.l.b16 %v254
        %v635 = vunpack.c.h.b16 %v254
        %v636 = vunpack.c.l.b16 %v255
        %v637 = vunpack.c.h.b16 %v255
        %v638 = vunpack.c.l.b16 %v256
        %v639 = vunpack.c.h.b16 %v256
        %v640 = vunpack.c.l.b16 %v257
        %v641 = vunpack.c.h.b16 %v257
        %v642 = vunpack.c.l.b16 %v258
        %v643 = vunpack.c.h.b16 %v258
        %v644 = vunpack.c.l.b16 %v259
        %v645 = vunpack.c.h.b16 %v259
        %v646 = vunpack.c.l.b16 %v260
        %v647 = vunpack.c.h.b16 %v260
        %v648 = vunpack.c.l.b16 %v261
        %v649 = vunpack.c.h.b16 %v261
        %v650 = vunpack.c.l.b16 %v262
        %v651 = vunpack.c.h.b16 %v262
        %v652 = vunpack.c.l.b16 %v263
        %v653 = vunpack.c.h.b16 %v263
        %v654 = vunpack.c.l.b16 %v264
        %v655 = vunpack.c.h.b16 %v264
        %v656 = vunpack.c.l.b16 %v265
        %v657 = vunpack.c.h.b16 %v265
        %v658 = vunpack.c.l.b16 %v266
        %v659 = vunpack.c.h.b16 %v266
        %v660 = vunpack.c.l.b16 %v267
        %v661 = vunpack.c.h.b16 %v267
        %v662 = vunpack.c.l.b16 %v268
        %v663 = vunpack.c.h.b16 %v268
        %v664 = vunpack.c.l.b16 %v269
        %v665 = vunpack.c.h.b16 %v269
        %v666 = vunpack.c.l.b16 %v270
        %v667 = vunpack.c.h.b16 %v270
        %v668 = vunpack.c.l.b16 %v271
        %v669 = vunpack.c.h.b16 %v271
        %v670 = vunpack.c.l.b16 %v272
        %v671 = vunpack.c.h.b16 %v272
        %v672 = vunpack.c.l.b16 %v273
        %v673 = vunpack.c.h.b16 %v273
        %v674 = vunpack.c.l.b16 %v274
        %v675 = vunpack.c.h.b16 %v274
        %v676 = vunpack.c.l.b16 %v275
        %v677 = vunpack.c.h.b16 %v275
        %v678 = vunpack.c.l.b16 %v276
        %v679 = vunpack.c.h.b16 %v276
        %v680 = vunpack.c.l.b16 %v277
        %v681 = vunpack.c.h.b16 %v277
        %v682 = vunpack.c.l.b16 %v278
        %v683 = vunpack.c.h.b16 %v278
        %v684 = vunpack.c.l.b16 %v279
        %v685 = vunpack.c.h.b16 %v279
        %v686 = vunpack.c.l.b16 %v280
        %v687 = vunpack.c.h.b16 %v280
        %v688 = vunpack.c.l.b16 %v281
        %v689 = vunpack.c.h.b16 %v281
        %v690 = vunpack.c.l.b16 %v282
        %v691 = vunpack.c.h.b16 %v282
        %v692 = vunpack.c.l.b16 %v283
        %v693 = vunpack.c.h.b16 %v283
        %v694 = vunpack.c.l.b16 %v284
        %v695 = vunpack.c.h.b16 %v284
        %v696 = vunpack.c.l.b16 %v285
        %v697 = vunpack.c.h.b16 %v285
        %v698 = vpack.c.b16 %v636, %v634
        %v699 = vpack.c.b16 %v637, %v635
        %v700 = vpack.c.b16 %v640, %v638
        %v701 = vpack.c.b16 %v641, %v639
        %v702 = vpack.c.b16 %v644, %v642
        %v703 = vpack.c.b16 %v645, %v643
        %v704 = vpack.c.b16 %v648, %v646
        %v705 = vpack.c.b16 %v649, %v647
        %v706 = vpack.c.b16 %v652, %v650
        %v707 = vpack.c.b16 %v653, %v651
        %v708 = vpack.c.b16 %v656, %v654
        %v709 = vpack.c.b16 %v657, %v655
        %v710 = vpack.c.b16 %v660, %v658
        %v711 = vpack.c.b16 %v661, %v659
        %v712 = vpack.c.b16 %v664, %v662
        %v713 = vpack.c.b16 %v665, %v663
        %v714 = vpack.c.b16 %v668, %v666
        %v715 = vpack.c.b16 %v669, %v667
        %v716 = vpack.c.b16 %v672, %v670
        %v717 = vpack.c.b16 %v673, %v671
        %v718 = vpack.c.b16 %v676, %v674
        %v719 = vpack.c.b16 %v677, %v675
        %v720 = vpack.c.b16 %v680, %v678
        %v721 = vpack.c.b16 %v681, %v679
        %v722 = vpack.c.b16 %v684, %v682
        %v723 = vpack.c.b16 %v685, %v683
        %v724 = vpack.c.b16 %v688, %v686
        %v725 = vpack.c.b16 %v689, %v687
        %v726 = vpack.c.b16 %v692, %v690
        %v727 = vpack.c.b16 %v693, %v691
        %v728 = vpack.c.b16 %v696, %v694
        %v729 = vpack.c.b16 %v697, %v695
        %762 = vmatpush.bf16.msra.mxu0 %v712
        %763 = vmatpush.bf16.msra.mxu0 %v710
        %764 = vmatpush.bf16.msra.mxu0 %v708
        %765 = vmatpush.bf16.msra.mxu0 %v706
        %766 = vmatpush.bf16.msra.mxu0 %v704
        %767 = vmatpush.bf16.msra.mxu0 %v702
        %768 = vmatpush.bf16.msra.mxu0 %v700
        %769 = vmatpush.bf16.msra.mxu0 %v698
        %770 = vmatmul.bf16.gmra.mxu0 %v594
        %v771 = vpop.f32.mrf.mxu0
        %v772 = vadd.f32 0.0, %v771
        %v773 = vpop.f32.mrf.mxu0
        %v774 = vadd.f32 0.0, %v773
        %775 = vmatmul.bf16.gmra.mxu0 %v596
        %v776 = vpop.f32.mrf.mxu0
        %v777 = vadd.f32 0.0, %v776
        %v778 = vpop.f32.mrf.mxu0
        %v779 = vadd.f32 0.0, %v778
        %780 = vdwg.mxu0
        %781 = vmatpush.bf16.msra.mxu0 %v728
        %782 = vmatpush.bf16.msra.mxu0 %v726
        %783 = vmatpush.bf16.msra.mxu0 %v724
        %784 = vmatpush.bf16.msra.mxu0 %v722
        %785 = vmatpush.bf16.msra.mxu0 %v720
        %786 = vmatpush.bf16.msra.mxu0 %v718
        %787 = vmatpush.bf16.msra.mxu0 %v716
        %788 = vmatpush.bf16.msra.mxu0 %v714
        %789 = vmatmul.bf16.gmra.mxu0 %v595
        %v790 = vpop.f32.mrf.mxu0
        %v791 = vadd.f32 %v772, %v790
        %v792 = vpop.f32.mrf.mxu0
        %v793 = vadd.f32 %v774, %v792
        %794 = vmatmul.bf16.gmra.mxu0 %v597
        %v795 = vpop.f32.mrf.mxu0
        %v796 = vadd.f32 %v777, %v795
        %v797 = vpop.f32.mrf.mxu0
        %v798 = vadd.f32 %v779, %v797
        %799 = vdwg.mxu0
        %800 = vmatpush.bf16.msra.mxu0 %v713
        %801 = vmatpush.bf16.msra.mxu0 %v711
        %802 = vmatpush.bf16.msra.mxu0 %v709
        %803 = vmatpush.bf16.msra.mxu0 %v707
        %804 = vmatpush.bf16.msra.mxu0 %v705
        %805 = vmatpush.bf16.msra.mxu0 %v703
        %806 = vmatpush.bf16.msra.mxu0 %v701
        %807 = vmatpush.bf16.msra.mxu0 %v699
        %808 = vmatmul.bf16.gmra.mxu0 %v594
        %v809 = vpop.f32.mrf.mxu0
        %v810 = vadd.f32 0.0, %v809
        %v811 = vpop.f32.mrf.mxu0
        %v812 = vadd.f32 0.0, %v811
        %813 = vmatmul.bf16.gmra.mxu0 %v596
        %v814 = vpop.f32.mrf.mxu0
        %v815 = vadd.f32 0.0, %v814
        %v816 = vpop.f32.mrf.mxu0
        %v817 = vadd.f32 0.0, %v816
        %818 = vdwg.mxu0
        %819 = vmatpush.bf16.msra.mxu0 %v729
        %820 = vmatpush.bf16.msra.mxu0 %v727
        %821 = vmatpush.bf16.msra.mxu0 %v725
        %822 = vmatpush.bf16.msra.mxu0 %v723
        %823 = vmatpush.bf16.msra.mxu0 %v721
        %824 = vmatpush.bf16.msra.mxu0 %v719
        %825 = vmatpush.bf16.msra.mxu0 %v717
        %826 = vmatpush.bf16.msra.mxu0 %v715
        %827 = vmatmul.bf16.gmra.mxu0 %v595
        %v828 = vpop.f32.mrf.mxu0
        %v829 = vadd.f32 %v810, %v828
        %v830 = vpop.f32.mrf.mxu0
        %v831 = vadd.f32 %v812, %v830
        %832 = vmatmul.bf16.gmra.mxu0 %v597
        %v833 = vpop.f32.mrf.mxu0
        %v834 = vadd.f32 %v815, %v833
        %v835 = vpop.f32.mrf.mxu0
        %v836 = vadd.f32 %v817, %v835
        %837 = vdwg.mxu0
        %838 = vst [vmem:[%s221] sm:$0xff] %v791
        %839 = vst [vmem:[%s221 + $0x8] sm:$0xff] %v829
        %840 = vst [vmem:[%s221 + $0x10] sm:$0xff] %v793
        %841 = vst [vmem:[%s221 + $0x18] sm:$0xff] %v831
        %842 = vst [vmem:[%s221 + $0x20] sm:$0xff] %v796
        %843 = vst [vmem:[%s221 + $0x28] sm:$0xff] %v834
        %844 = vst [vmem:[%s221 + $0x30] sm:$0xff] %v798
        %845 = vst [vmem:[%s221 + $0x38] sm:$0xff] %v836
        %s846 = sand.u32 %s95, 1
        %s847 = scalar_lea.sflag [#allocation4], %s846
        %s848 = sand.u32 %s95, 1
        %s849 = smul.addr %s848, 64
        %s850 = scalar_lea.vmem [#allocation8], %s849
        // Predicated region
        $region45: #{tpu_custom_call.1} parent=31 // pred_check
          %p851 = pneg %p105
        $region46: #{tpu_custom_call.1} parent=31 // pred_check_branch
          %853 = sbr.rel (%p851) target = $region48
        $region47: #{tpu_custom_call.1} parent=31 // pred_region
          %855 = vsyncadd %s847, 0
          %s856 = smul.addr %s19, 2
          %s857 = smul.addr %s856, 8
          %s858 = scalar_lea.hbm %s3, %s857
          %s859 = sshll.u32 %s850, 4
          %s860 = int_to_ptr.vmem [resolvable:$true] %s859
          %s861 = sshll.u32 %s858, 4
          %s862 = int_to_ptr.hbm [resolvable:$true] %s861
          %867 = dma.vmem_to_hbm [thread:$0]  %s860, 1024, %s862, %s847, 256, 512, 16
        $region48: #{tpu_custom_call.1} parent=31 // pred_fallthru
          _
      $region32: #{tpu_custom_call.1} parent=5 // pred_fallthru
        _
      %p868 = scmp.le.s32.totalorder 2, %s14
      // Predicated region
      $region49: #{tpu_custom_call.1} parent=5 // pred_check
        %p869 = pneg %p868
      $region50: #{tpu_custom_call.1} parent=5 // pred_check_branch
        %871 = sbr.rel (%p869) target = $region52
      $region51: #{tpu_custom_call.1} parent=5 // pred_region
        %s872 = ssub.s32 %s14, 2
        // Predicated region
        $region53: #{tpu_custom_call.1} parent=51 // pred_check
          %p873 = pneg %p111
        $region54: #{tpu_custom_call.1} parent=51 // pred_check_branch
          %875 = sbr.rel (%p873) target = $region56
        $region55: #{tpu_custom_call.1} parent=51 // pred_region
          %s876 = sand.u32 %s96, 1
          %s877 = scalar_lea.sflag [#allocation4], %s876
          %s878 = sand.u32 %s96, 1
          %s879 = smul.addr %s878, 64
          %s880 = scalar_lea.vmem [#allocation8], %s879
          %882 = dma.done %s877, 1024
        $region56: #{tpu_custom_call.1} parent=51 // pred_fallthru
          _
      $region52: #{tpu_custom_call.1} parent=5 // pred_fallthru
        _
    $region6: #{tpu_custom_call.1} parent=1 // loop_footer
      %s18 = sadd.s32 1, %s14
    $region7: #{tpu_custom_call.1} parent=1 // loop_footer_branch
      %13 = sbr.rel target = $region3
    $region8: #{tpu_custom_call.1} parent=1 // loop_exit
      _
    %883 = vsyncpa [#allocation3], 1
    %s884 = scalar_lea.sflag [#allocation3], 1
    %885 = vsyncpa %s884, 1
    %886 = vsyncpa [#allocation6], 1
    %887 = vsyncpa [#allocation4], 1
    %s888 = scalar_lea.sflag [#allocation4], 1
    %889 = vsyncpa %s888, 1

</llo_original>
